<compile_context>
chip_gen: v7x
topology: tpu7x:2x2x1
jax: 0.10.0
libtpu: 0.0.40
codegen_flags: <defaults>
</compile_context>

<pallas_src>
import functools

import jax
import jax.numpy as jnp
from jax.experimental import pallas as pl
from jax.experimental.pallas import tpu as pltpu


def _round_up(x, m):
    return ((x + m - 1) // m) * m


def _simple_score_kernel(h_ref, r_ref, t_ref, o_ref):
    # h_ref / r_ref / t_ref: [TILE_N, D]  (D on the lane axis)
    # o_ref:                 [TILE_N, 1]
    h = h_ref[...].astype(jnp.float32)
    r = r_ref[...].astype(jnp.float32)
    t = t_ref[...].astype(jnp.float32)
    d = t.shape[-1]
    # Swapping the two halves of an even-length-D row == rotation by D/2.
    # (Left/right rotation coincide only because shift == D/2 exactly.)
    t_flipped = pltpu.roll(t, shift=d // 2, axis=1)
    prod = h * r * t_flipped
    # XLU cross-lane reduce; hidden under the input DMAs (kernel is HBM-bound).
    o_ref[...] = jnp.sum(prod, axis=-1, keepdims=True).astype(o_ref.dtype)


@functools.partial(jax.jit, static_argnames=("tile_n",))
def simple_score(entity, relation, h_index, t_index, r_index, *, tile_n=4096):
    """Pallas-backed SimplE score. Returns f32 scores with h_index's shape."""
    d = entity.shape[-1]
    if d % 2 != 0:
        raise ValueError("SimplE half-swap requires an even embedding_dim")

    idx_shape = h_index.shape
    h_idx = h_index.reshape(-1).astype(jnp.int32)
    t_idx = t_index.reshape(-1).astype(jnp.int32)
    r_idx = r_index.reshape(-1).astype(jnp.int32)
    n = h_idx.shape[0]

    # Sublane granularity: 8 rows for 32-bit tables, 16 for 16-bit (bf16 packing).
    itemsize = jnp.dtype(entity.dtype).itemsize
    sub = 8 if itemsize >= 4 else 16

    tn = _round_up(max(sub, min(int(tile_n), _round_up(n, sub))), sub)
    # Give both v7x TensorCores work: if everything fits in one tile but there
    # is enough for two, split into two grid steps.
    if n <= tn and n > 2 * sub:
        tn = _round_up(-(-n // 2), sub)
    n_pad = _round_up(n, tn)

    # Pad only the tiny index arrays (pad value 0 is a valid row id); padded
    # rows' scores are discarded below. Avoids copying the gathered arrays.
    if n_pad != n:
        pad = (0, n_pad - n)
        h_idx = jnp.pad(h_idx, pad)
        t_idx = jnp.pad(t_idx, pad)
        r_idx = jnp.pad(r_idx, pad)

    # Row gathers stay in XLA; allow_input_fusion below lets XLA fuse them
    # into the Pallas call's operands.
    h = entity[h_idx]
    r = relation[r_idx]
    t = entity[t_idx]

    grid = (n_pad // tn,)

    out = pl.pallas_call(
        _simple_score_kernel,
        out_shape=jax.ShapeDtypeStruct((n_pad, 1), jnp.float32),
        grid_spec=pltpu.PrefetchScalarGridSpec(
            num_scalar_prefetch=0,
            grid=grid,
            in_specs=[
                pl.BlockSpec((tn, d), lambda i: (i, 0)),
                pl.BlockSpec((tn, d), lambda i: (i, 0)),
                pl.BlockSpec((tn, d), lambda i: (i, 0)),
            ],
            out_specs=pl.BlockSpec((tn, 1), lambda i: (i, 0)),
        ),
        compiler_params=pltpu.CompilerParams(
            dimension_semantics=("parallel",),          # shard tiles across v7x's 2 TCs
            allow_input_fusion=(True, True, True),      # fuse the gathers into the call
            vmem_limit_bytes=32 * 1024 * 1024,          # tn=4096 f32 needs ~12.6 MiB
        ),
    )(h, r, t)

    return out[:n, 0].reshape(idx_shape)


class SimplE:
    """JAX/Pallas port of the SimplE module (forward pass only)."""

    def __init__(self, num_entity, num_relation, embedding_dim,
                 l3_regularization=0, key=None):
        self.num_entity = num_entity
        self.num_relation = num_relation
        self.l3_regularization = l3_regularization
        if key is None:
            key = jax.random.PRNGKey(0)
        k_e, k_r = jax.random.split(key)
        # nn.init.uniform_(-0.5, 0.5)
        self.entity = jax.random.uniform(
            k_e, (num_entity, embedding_dim), jnp.float32, minval=-0.5, maxval=0.5)
        self.relation = jax.random.uniform(
            k_r, (num_relation, embedding_dim), jnp.float32, minval=-0.5, maxval=0.5)

    def forward(self, graph, h_index, t_index, r_index, all_loss=None, metric=None):
        score = simple_score(self.entity, self.relation, h_index, t_index, r_index)
        # TODO(synk): l3_regularization branch only touches the training loss
        # and metrics, not the returned score; omitted from the kernel path.
        return score


def _reference_score(entity, relation, h_index, t_index, r_index):
    h = entity[h_index.reshape(-1)]
    r = relation[r_index.reshape(-1)]
    t = entity[t_index.reshape(-1)]
    half = t.shape[-1] // 2
    t_flipped = jnp.concatenate([t[:, half:], t[:, :half]], axis=-1)
    return (h * r * t_flipped).sum(axis=-1).reshape(h_index.shape)


if __name__ == "__main__":
    num_entity, num_relation, embedding_dim = 32, 8, 128
    batch = 20  # not a multiple of 8 -> exercises the index-padding path

    key = jax.random.PRNGKey(0)
    k_model, k_h, k_t, k_r = jax.random.split(key, 4)

    model = SimplE(num_entity, num_relation, embedding_dim, key=k_model)

    h_index = jax.random.randint(k_h, (batch,), 0, num_entity)
    t_index = jax.random.randint(k_t, (batch,), 0, num_entity)
    r_index = jax.random.randint(k_r, (batch,), 0, num_relation)

    expected = _reference_score(model.entity, model.relation,
                                h_index, t_index, r_index)

    # 1) Default tile size (auto-split into 2 tiles so both v7x TCs get work).
    score = model.forward(None, h_index, t_index, r_index)
    score = jax.block_until_ready(score)
    assert score.shape == (batch,)
    assert jnp.allclose(score, expected, atol=1e-5, rtol=1e-5)

    # 2) Forced small tile -> multi-step pipelined grid + padded remainder.
    score_tiled = simple_score(model.entity, model.relation,
                               h_index, t_index, r_index, tile_n=8)
    score_tiled = jax.block_until_ready(score_tiled)
    assert score_tiled.shape == (batch,)
    assert jnp.allclose(score_tiled, expected, atol=1e-5, rtol=1e-5)

    # 3) 2-D index shape (batch, num_negative) like torchdrug uses.
    h2 = h_index.reshape(4, 5)
    t2 = t_index.reshape(4, 5)
    r2 = r_index.reshape(4, 5)
    score_2d = simple_score(model.entity, model.relation, h2, t2, r2)
    score_2d = jax.block_until_ready(score_2d)
    assert score_2d.shape == (4, 5)
    assert jnp.allclose(score_2d, expected.reshape(4, 5), atol=1e-5, rtol=1e-5)

    print("KERNEL_OK")
</pallas_src>

<mosaic_0001>
module attributes {stable_mosaic.version = 11 : i64} {
  func.func @_simple_score_kernel(%arg0: i32, %arg1: memref<16x128xf32, #tpu.memory_space<vmem>>, %arg2: memref<16x128xf32, #tpu.memory_space<vmem>>, %arg3: memref<16x128xf32, #tpu.memory_space<vmem>>, %arg4: memref<16x1xf32, #tpu.memory_space<vmem>>) attributes {dimension_semantics = [#tpu.dimension_semantics<parallel>], iteration_bounds = array<i64: 2>, scalar_prefetch = 0 : i64, scratch_operands = 0 : i64, tpu.core_type = #tpu.core_type<tc>, window_params = [{transform_indices = @transform_0, window_bounds = array<i64: 16, 128>}, {transform_indices = @transform_1, window_bounds = array<i64: 16, 128>}, {transform_indices = @transform_2, window_bounds = array<i64: 16, 128>}, {transform_indices = @transform_3, window_bounds = array<i64: 16, 1>}]} {
    %c0 = arith.constant 0 : index
    %c0_0 = arith.constant 0 : index
    %0 = vector.load %arg1[%c0, %c0_0] : memref<16x128xf32, #tpu.memory_space<vmem>>, vector<16x128xf32>
    %c0_1 = arith.constant 0 : index
    %c0_2 = arith.constant 0 : index
    %1 = vector.load %arg2[%c0_1, %c0_2] : memref<16x128xf32, #tpu.memory_space<vmem>>, vector<16x128xf32>
    %c0_3 = arith.constant 0 : index
    %c0_4 = arith.constant 0 : index
    %2 = vector.load %arg3[%c0_3, %c0_4] : memref<16x128xf32, #tpu.memory_space<vmem>>, vector<16x128xf32>
    %c64_i32 = arith.constant 64 : i32
    %3 = tpu.dynamic_rotate %2 by %c64_i32 dim 1 : vector<16x128xf32>, i32 -> vector<16x128xf32>
    %4 = arith.mulf %0, %1 : vector<16x128xf32>
    %5 = arith.mulf %4, %3 : vector<16x128xf32>
    %cst = arith.constant dense<0.000000e+00> : vector<16xf32>
    %6 = vector.multi_reduction <add>, %5, %cst [1] : vector<16x128xf32> to vector<16xf32>
    %7 = vector.shape_cast %6 : vector<16xf32> to vector<16x1xf32>
    %c0_5 = arith.constant 0 : index
    %c0_6 = arith.constant 0 : index
    %8 = vector.load %arg4[%c0_5, %c0_6] : memref<16x1xf32, #tpu.memory_space<vmem>>, vector<16x1xf32>
    tpu.vector_store %arg4[%c0_5, %c0_6], %7 {strides = array<i32>} : memref<16x1xf32, #tpu.memory_space<vmem>>, vector<16x1xf32>,
    return
  }
  func.func @transform_0(%arg0: i32) -> (i32, i32) {
    %c0_i32 = arith.constant 0 : i32
    %c0_i32_0 = arith.constant 0 : i32
    return %arg0, %c0_i32 : i32, i32
  }
  func.func @transform_1(%arg0: i32) -> (i32, i32) {
    %c0_i32 = arith.constant 0 : i32
    %c0_i32_0 = arith.constant 0 : i32
    return %arg0, %c0_i32 : i32, i32
  }
  func.func @transform_2(%arg0: i32) -> (i32, i32) {
    %c0_i32 = arith.constant 0 : i32
    %c0_i32_0 = arith.constant 0 : i32
    return %arg0, %c0_i32 : i32, i32
  }
  func.func @transform_3(%arg0: i32) -> (i32, i32) {
    %c0_i32 = arith.constant 0 : i32
    %c0_i32_0 = arith.constant 0 : i32
    return %arg0, %c0_i32 : i32, i32
  }
}

</mosaic_0001>

<llo_original>
// kernel: simple_score.1
$region0: #{simple_score.1}
  #allocation0 [shape = 'u32[]', space=smem, size = 0x4, offset = 0x4, fixed_abs, tag = 'smem constant byte address 0x4 - core index']
  #allocation1 [shape = 'u32[144,128]{1,0:T(1,128)}', space=vmem, size = 0x12000, scoped, tag = 'internal scratch']
  %s0 = inlined_call_operand.vmem [shape: f32[32,128], index: 0, kind: input, shape index: {}]
  %s1 = inlined_call_operand.vmem [shape: f32[32,128], index: 1, kind: input, shape index: {}]
  %s2 = inlined_call_operand.vmem [shape: f32[32,128], index: 2, kind: input, shape index: {}]
  %s3 = inlined_call_operand.vmem [shape: f32[32,1], index: 3, kind: output, shape index: {}]
  %s4 = sld [smem:[#allocation0]]
  $region45: #{simple_score.1} parent=0
    _
  %s6 = ssub.s32 1, %s4
  %s7 = scalar_select 0, %s6, %s4
  loop: start=0, step=1, limit=4
  $region2: #{simple_score.1} parent=0 // loop_pre_header
    _
  $region3: #{simple_score.1} parent=0 // loop_header
    %s9 = sphi 0, %s13
    %p10 = scmp.ge.s32.totalorder %s9, 4
    %s19 = sphi 0, %s21
    %s22 = sphi 0, %s19
    %s23 = sphi 0, %s22
    %s39 = sphi 0, %s23
    %s45 = sphi 0, %s47
    %s48 = sphi 0, %s45
    %s49 = sphi 0, %s48
    %s65 = sphi 0, %s49
    %s71 = sphi 0, %s73
    %s74 = sphi 0, %s71
    %s75 = sphi 0, %s74
    %s91 = sphi 0, %s75
    %s97 = sphi 0, %s99
    %s100 = sphi 0, %s97
    %s101 = sphi 0, %s100
    %s117 = sphi 0, %s101
  $region4: #{simple_score.1} parent=0 // loop_header_branch
    %12 = sbr.rel (%p10) target = $region8
  $region5: #{simple_score.1} parent=0 // loop_body
    %s14 = ssub.s32 %s9, 1
    %s15 = ssub.s32 %s9, 2
    %s16 = sadd.s32 %s9, 1
    %s17 = ssub.s32 %s9, %s16
    %p18 = scmp.eq.s32.totalorder %s17, 0
    %s20 = sadd.s32 %s19, 1
    %s21 = scalar_select %p18, %s19, %s20
    %p24 = pneg %p18
    %p25 = scmp.eq.s32.totalorder %s9, 1
    %p26 = por %p24, %p25
    %p27 = scmp.ne.s32.totalorder %s19, %s22
    %p28 = scmp.eq.s32.totalorder %s9, 0
    %p29 = por %p27, %p28
    %p30 = scmp.ne.s32.totalorder %s19, %s22
    %p31 = scmp.eq.s32.totalorder %s14, 1
    %p32 = por %p30, %p31
    %p33 = scmp.ne.s32.totalorder %s22, %s23
    %p34 = scmp.eq.s32.totalorder %s14, 0
    %p35 = por %p33, %p34
    %p36 = scmp.ne.s32.totalorder %s22, %s23
    %p37 = scmp.eq.s32.totalorder %s15, 1
    %p38 = por %p36, %p37
    %p40 = scmp.ne.s32.totalorder %s23, %s39
    %p41 = scmp.eq.s32.totalorder %s15, 0
    %p42 = por %p40, %p41
    %s43 = ssub.s32 %s9, %s16
    %p44 = scmp.eq.s32.totalorder %s43, 0
    %s46 = sadd.s32 %s45, 1
    %s47 = scalar_select %p44, %s45, %s46
    %p50 = pneg %p44
    %p51 = scmp.eq.s32.totalorder %s9, 1
    %p52 = por %p50, %p51
    %p53 = scmp.ne.s32.totalorder %s45, %s48
    %p54 = scmp.eq.s32.totalorder %s9, 0
    %p55 = por %p53, %p54
    %p56 = scmp.ne.s32.totalorder %s45, %s48
    %p57 = scmp.eq.s32.totalorder %s14, 1
    %p58 = por %p56, %p57
    %p59 = scmp.ne.s32.totalorder %s48, %s49
    %p60 = scmp.eq.s32.totalorder %s14, 0
    %p61 = por %p59, %p60
    %p62 = scmp.ne.s32.totalorder %s48, %s49
    %p63 = scmp.eq.s32.totalorder %s15, 1
    %p64 = por %p62, %p63
    %p66 = scmp.ne.s32.totalorder %s49, %s65
    %p67 = scmp.eq.s32.totalorder %s15, 0
    %p68 = por %p66, %p67
    %s69 = ssub.s32 %s9, %s16
    %p70 = scmp.eq.s32.totalorder %s69, 0
    %s72 = sadd.s32 %s71, 1
    %s73 = scalar_select %p70, %s71, %s72
    %p76 = pneg %p70
    %p77 = scmp.eq.s32.totalorder %s9, 1
    %p78 = por %p76, %p77
    %p79 = scmp.ne.s32.totalorder %s71, %s74
    %p80 = scmp.eq.s32.totalorder %s9, 0
    %p81 = por %p79, %p80
    %p82 = scmp.ne.s32.totalorder %s71, %s74
    %p83 = scmp.eq.s32.totalorder %s14, 1
    %p84 = por %p82, %p83
    %p85 = scmp.ne.s32.totalorder %s74, %s75
    %p86 = scmp.eq.s32.totalorder %s14, 0
    %p87 = por %p85, %p86
    %p88 = scmp.ne.s32.totalorder %s74, %s75
    %p89 = scmp.eq.s32.totalorder %s15, 1
    %p90 = por %p88, %p89
    %p92 = scmp.ne.s32.totalorder %s75, %s91
    %p93 = scmp.eq.s32.totalorder %s15, 0
    %p94 = por %p92, %p93
    %s95 = ssub.s32 %s9, %s16
    %p96 = scmp.eq.s32.totalorder %s95, 0
    %s98 = sadd.s32 %s97, 1
    %s99 = scalar_select %p96, %s97, %s98
    %p102 = pneg %p96
    %p103 = scmp.eq.s32.totalorder %s9, 1
    %p104 = por %p102, %p103
    %p105 = scmp.ne.s32.totalorder %s97, %s100
    %p106 = scmp.eq.s32.totalorder %s9, 0
    %p107 = por %p105, %p106
    %p108 = scmp.ne.s32.totalorder %s97, %s100
    %p109 = scmp.eq.s32.totalorder %s14, 1
    %p110 = por %p108, %p109
    %p111 = scmp.ne.s32.totalorder %s100, %s101
    %p112 = scmp.eq.s32.totalorder %s14, 0
    %p113 = por %p111, %p112
    %p114 = scmp.ne.s32.totalorder %s100, %s101
    %p115 = scmp.eq.s32.totalorder %s15, 1
    %p116 = por %p114, %p115
    %p118 = scmp.ne.s32.totalorder %s101, %s117
    %p119 = scmp.eq.s32.totalorder %s15, 0
    %p120 = por %p118, %p119
    %p121 = scmp.le.s32.totalorder 1, %s9
    %p122 = scmp.lt.s32.totalorder %s9, 3
    %p123 = pnand %p121, %p122
    %p124 = pneg %p123
    // Predicated region
    $region9: #{simple_score.1} parent=5 // pred_check
      _
    $region10: #{simple_score.1} parent=5 // pred_check_branch
      %126 = sbr.rel (%p123) target = $region12
    $region11: #{simple_score.1} parent=5 // pred_region
      %s127 = ssub.s32 %s9, 1
    $region12: #{simple_score.1} parent=5 // pred_fallthru
      _
    %p128 = scmp.lt.s32.totalorder %s9, 2
    // Predicated region
    $region13: #{simple_score.1} parent=5 // pred_check
      %p129 = pneg %p128
    $region14: #{simple_score.1} parent=5 // pred_check_branch
      %131 = sbr.rel (%p129) target = $region16
    $region15: #{simple_score.1} parent=5 // pred_region
      // Predicated region
      $region17: #{simple_score.1} parent=15 // pred_check
        %p132 = pneg %p29
      $region18: #{simple_score.1} parent=15 // pred_check_branch
        %134 = sbr.rel (%p132) target = $region20
      $region19: #{simple_score.1} parent=15 // pred_region
        %s135 = smul.u32 2, %s9
        %p136 = scmp.lt.s32.totalorder %s135, 3
        %s137 = scalar_select %p136, %s135, 3
        %s138 = smul.addr %s137, 8
        %s139 = scalar_lea.vmem %s0, %s138
        %s140 = smul.u32 2, %s9
      $region20: #{simple_score.1} parent=15 // pred_fallthru
        _
      // Predicated region
      $region21: #{simple_score.1} parent=15 // pred_check
        %p141 = pneg %p55
      $region22: #{simple_score.1} parent=15 // pred_check_branch
        %143 = sbr.rel (%p141) target = $region24
      $region23: #{simple_score.1} parent=15 // pred_region
        %s144 = smul.u32 2, %s9
        %p145 = scmp.lt.s32.totalorder %s144, 3
        %s146 = scalar_select %p145, %s144, 3
        %s147 = smul.addr %s146, 8
        %s148 = scalar_lea.vmem %s1, %s147
        %s149 = smul.u32 2, %s9
      $region24: #{simple_score.1} parent=15 // pred_fallthru
        _
      // Predicated region
      $region25: #{simple_score.1} parent=15 // pred_check
        %p150 = pneg %p81
      $region26: #{simple_score.1} parent=15 // pred_check_branch
        %152 = sbr.rel (%p150) target = $region28
      $region27: #{simple_score.1} parent=15 // pred_region
        %s153 = smul.u32 2, %s9
        %p154 = scmp.lt.s32.totalorder %s153, 3
        %s155 = scalar_select %p154, %s153, 3
        %s156 = smul.addr %s155, 8
        %s157 = scalar_lea.vmem %s2, %s156
        %s158 = smul.u32 2, %s9
      $region28: #{simple_score.1} parent=15 // pred_fallthru
        _
    $region16: #{simple_score.1} parent=5 // pred_fallthru
      _
    %p159 = scmp.le.s32.totalorder 1, %s9
    %p160 = scmp.lt.s32.totalorder %s9, 3
    %p161 = pnand %p159, %p160
    %p162 = pneg %p161
    // Predicated region
    $region29: #{simple_score.1} parent=5 // pred_check
      _
    $region30: #{simple_score.1} parent=5 // pred_check_branch
      %164 = sbr.rel (%p161) target = $region32
    $region31: #{simple_score.1} parent=5 // pred_region
      %s165 = ssub.s32 %s9, 1
      %s166 = smul.u32 2, %s14
      %p167 = scmp.lt.s32.totalorder %s166, 3
      %s168 = scalar_select %p167, %s166, 3
      %s169 = smul.addr %s168, 8
      %s170 = scalar_lea.vmem %s0, %s169
      %p171 = pneg %p35
      %p172 = pneg %p32
      %s173 = smul.u32 2, %s14
      %p174 = scmp.lt.s32.totalorder %s173, 3
      %s175 = scalar_select %p174, %s173, 3
      %s176 = smul.addr %s175, 8
      %s177 = scalar_lea.vmem %s1, %s176
      %p178 = pneg %p61
      %p179 = pneg %p58
      %s180 = smul.u32 2, %s14
      %p181 = scmp.lt.s32.totalorder %s180, 3
      %s182 = scalar_select %p181, %s180, 3
      %s183 = smul.addr %s182, 8
      %s184 = scalar_lea.vmem %s2, %s183
      %p185 = pneg %p87
      %p186 = pneg %p84
      %p187 = pneg %p113
      %p188 = pneg %p110
      %s189 = smul.u32 2, %s14
      %p190 = scmp.lt.s32.totalorder %s189, 3
      %s191 = scalar_select %p190, %s189, 3
      %s192 = smul.addr %s191, 8
      %s193 = scalar_lea.vmem %s3, %s192
      %s194 = smul.u32 2, %s14
      %p195 = scmp.lt.s32.totalorder %s194, 3
      %s196 = scalar_select %p195, %s194, 3
      %s197 = smul.addr %s196, 8
      %s198 = scalar_lea.vmem %s0, %s197
      %s199 = smul.u32 2, %s14
      %s200 = smul.u32 2, %s14
      %p201 = scmp.lt.s32.totalorder %s200, 3
      %s202 = scalar_select %p201, %s200, 3
      %s203 = smul.addr %s202, 8
      %s204 = scalar_lea.vmem %s1, %s203
      %s205 = smul.u32 2, %s14
      %s206 = smul.u32 2, %s14
      %p207 = scmp.lt.s32.totalorder %s206, 3
      %s208 = scalar_select %p207, %s206, 3
      %s209 = smul.addr %s208, 8
      %s210 = scalar_lea.vmem %s2, %s209
      %s211 = smul.u32 2, %s14
      %s212 = smul.u32 2, %s14
      %p213 = scmp.lt.s32.totalorder %s212, 3
      %s214 = scalar_select %p213, %s212, 3
      %s215 = smul.addr %s214, 8
      %s216 = scalar_lea.vmem %s3, %s215
      %s217 = smul.u32 2, %s14
      %v218 = vld [vmem:[%s198] sm:$0xff]
      %v219 = vld [vmem:[%s198 + $0x8] sm:$0xff]
      %v220 = vld [vmem:[%s204] sm:$0xff]
      %v221 = vld [vmem:[%s204 + $0x8] sm:$0xff]
      %v222 = vld [vmem:[%s210] sm:$0xff]
      %v223 = vld [vmem:[%s210 + $0x8] sm:$0xff]
      %224 = vrot.lane.b32.xlu0 %v222, 64
      %v225 = vpop.permute.xlu0 %224
      %226 = vrot.lane.b32.xlu0 %v223, 64
      %v227 = vpop.permute.xlu0 %226
      %v228 = vmul.f32 %v218, %v220
      %v229 = vmul.f32 %v219, %v221
      %v230 = vmul.f32 %v228, %v225
      %v231 = vmul.f32 %v229, %v227
      %232 = vadd.xlane.f32.xlu0 %v230
      %v233 = vpop.xlane.xlu0 %232
      %234 = vadd.xlane.f32.xlu0 %v231
      %v235 = vpop.xlane.xlu0 %234
      %vm236 = vcmask 7168
      %237 = vst.msk [vmem:[%s216] sm:$0xff] %vm236, %v233
      %238 = vst.msk [vmem:[%s216 + $0x8] sm:$0xff] %vm236, %v235
      %s239 = smul.u32 2, %s14
      %p240 = scmp.lt.s32.totalorder %s239, 3
      %s241 = scalar_select %p240, %s239, 3
      %s242 = smul.addr %s241, 8
      %s243 = scalar_lea.vmem %s3, %s242
      // Predicated region
      $region33: #{simple_score.1} parent=31 // pred_check
        %p244 = pneg %p110
      $region34: #{simple_score.1} parent=31 // pred_check_branch
        %246 = sbr.rel (%p244) target = $region36
      $region35: #{simple_score.1} parent=31 // pred_region
        %s247 = smul.u32 2, %s14
      $region36: #{simple_score.1} parent=31 // pred_fallthru
        _
    $region32: #{simple_score.1} parent=5 // pred_fallthru
      _
    %p248 = scmp.le.s32.totalorder 2, %s9
    // Predicated region
    $region37: #{simple_score.1} parent=5 // pred_check
      %p249 = pneg %p248
    $region38: #{simple_score.1} parent=5 // pred_check_branch
      %251 = sbr.rel (%p249) target = $region40
    $region39: #{simple_score.1} parent=5 // pred_region
      %s252 = ssub.s32 %s9, 2
      // Predicated region
      $region41: #{simple_score.1} parent=39 // pred_check
        %p253 = pneg %p116
      $region42: #{simple_score.1} parent=39 // pred_check_branch
        %255 = sbr.rel (%p253) target = $region44
      $region43: #{simple_score.1} parent=39 // pred_region
        %s256 = smul.u32 2, %s15
        %p257 = scmp.lt.s32.totalorder %s256, 3
        %s258 = scalar_select %p257, %s256, 3
        %s259 = smul.addr %s258, 8
        %s260 = scalar_lea.vmem %s3, %s259
      $region44: #{simple_score.1} parent=39 // pred_fallthru
        _
    $region40: #{simple_score.1} parent=5 // pred_fallthru
      _
  $region6: #{simple_score.1} parent=0 // loop_footer
    %s13 = sadd.s32 1, %s9
  $region7: #{simple_score.1} parent=0 // loop_footer_branch
    %8 = sbr.rel target = $region3
  $region8: #{simple_score.1} parent=0 // loop_exit
    _

</llo_original>
